<compile_context>
chip_gen: v6e
topology: v6e:2x2x1
jax: 0.10.0
libtpu: 0.0.40
codegen_flags: <defaults>
</compile_context>

<pallas_src>
import functools
import math

import jax
import jax.numpy as jnp
from jax import lax
from jax.experimental import pallas as pl
from jax.experimental.pallas import tpu as pltpu


# ----------------------------------------------------------------------------
# Hardware-aware configuration
# ----------------------------------------------------------------------------
@functools.lru_cache(maxsize=None)
def _hw_caps():
    """Generation-aware VMEM budget + max tile sizes (conservative fallback)."""
    vmem_bytes = 64 * 1024 * 1024           # assume v7x-like if the query fails
    try:
        info = pltpu.get_tpu_info()
        cap = getattr(info, "vmem_capacity_bytes", None)
        if cap:
            vmem_bytes = int(cap)
    except Exception:
        pass
    if vmem_bytes <= 64 * 1024 * 1024:       # v7x: 64 MiB physical per TC
        return {"vmem_limit": 48 * 1024 * 1024, "max_tile": 512}
    return {"vmem_limit": 96 * 1024 * 1024, "max_tile": 1024}   # v5e / v6e


def _pick_tile(dim, candidates):
    """Largest candidate that evenly divides `dim`, else the full dim."""
    for c in candidates:
        if dim >= c and dim % c == 0:
            return c
    return dim


def _m_tiles(max_tile):
    return tuple(t for t in (1024, 512, 256, 128, 64, 32, 16, 8) if t <= max_tile)


def _lane_tiles(max_tile):
    # Prefer >=256-wide lane / contraction tiles (v6e/v7x MXU is 256-wide).
    return tuple(t for t in (1024, 512, 256, 128) if t <= max_tile)


# ----------------------------------------------------------------------------
# Kernels
# ----------------------------------------------------------------------------
def _linear_kernel(*refs, relu, has_bias, has_res):
    """refs = (x, w, [bias], [residual], out, acc)."""
    x_ref, w_ref = refs[0], refs[1]
    pos = 2
    b_ref = None
    res_ref = None
    if has_bias:
        b_ref = refs[pos]
        pos += 1
    if has_res:
        res_ref = refs[pos]
        pos += 1
    o_ref, acc_ref = refs[pos], refs[pos + 1]

    k_idx = pl.program_id(2)

    @pl.when(k_idx == 0)
    def _():
        acc_ref[...] = jnp.zeros_like(acc_ref)

    # bf16 operands, f32 accumulation: MXU-native path on v6e/v7x.
    acc_ref[...] += jnp.dot(x_ref[...].astype(jnp.bfloat16),
                            w_ref[...].astype(jnp.bfloat16),
                            preferred_element_type=jnp.float32)

    @pl.when(k_idx == pl.num_programs(2) - 1)
    def _():
        y = acc_ref[...]
        if has_bias:
            y = y + b_ref[...].astype(jnp.float32)      # (1, tn) broadcasts
        if relu:
            y = jnp.maximum(y, 0.0)
        if has_res:
            y = y + res_ref[...].astype(jnp.float32)    # fused residual add (f32)
        o_ref[...] = y.astype(o_ref.dtype)


def _attn_kernel(q_ref, k_ref, v_ref, m_ref, o_ref, *, h, dk, scale):
    """One (batch, q-tile) step of multi-head attention.

    q_ref: (1, tq, D) view of the query columns of the fused projection,
    k_ref/v_ref: (1, Sk, D) views of key / value columns,
    m_ref: (1, tq, Sk) additive mask (0 / -1e9),
    o_ref: (1, tq, D).
    """
    madd = m_ref[0].astype(jnp.float32)                 # f32 mask add

    for j in range(h):                                  # static unroll over heads
        lo = j * dk
        qj = q_ref[0, :, lo:lo + dk].astype(jnp.bfloat16)
        kj = k_ref[0, :, lo:lo + dk].astype(jnp.bfloat16)
        vj = v_ref[0, :, lo:lo + dk].astype(jnp.bfloat16)

        # QK^T without an explicit transpose: contract dim 1 of both operands.
        logits = lax.dot_general(qj, kj, (((1,), (1,)), ((), ())),
                                 preferred_element_type=jnp.float32)
        logits = logits * scale + madd                  # softmax stays in f32
        mx = jnp.max(logits, axis=-1, keepdims=True)
        p = jnp.exp(logits - mx)
        denom = jnp.sum(p, axis=-1, keepdims=True)
        p = p * pl.reciprocal(denom, approx=True)       # EUP slot, frees VALU

        outj = lax.dot_general(p.astype(jnp.bfloat16), vj,
                               (((1,), (0,)), ((), ())),
                               preferred_element_type=jnp.float32)
        # Per-head store: short live ranges, no concat / lane reassembly.
        o_ref[0, :, lo:lo + dk] = outj.astype(o_ref.dtype)


def _layernorm_kernel(x_ref, a_ref, b_ref, o_ref, *, eps):
    # Matches the PyTorch module: unbiased std (divide by D-1) and
    # divides by (std + eps), not rsqrt(var + eps).
    x = x_ref[...].astype(jnp.float32)
    d = x.shape[-1]
    mean = jnp.mean(x, axis=-1, keepdims=True)
    diff = x - mean
    var = jnp.sum(diff * diff, axis=-1, keepdims=True) * (1.0 / (d - 1))
    std = jnp.sqrt(var)
    o_ref[...] = (a_ref[0] * diff / (std + eps) + b_ref[0]).astype(o_ref.dtype)


# ----------------------------------------------------------------------------
# Kernel wrappers
# ----------------------------------------------------------------------------
def linear(x2d, w, b=None, relu=False, residual=None):
    """x2d: (M, K) f32, w: (K, N) bf16/f32, optional b: (N,), residual: (M, N)."""
    caps = _hw_caps()
    M, K = x2d.shape
    N = w.shape[1]
    tm = _pick_tile(M, _m_tiles(caps["max_tile"]))
    tn = _pick_tile(N, _lane_tiles(caps["max_tile"]))
    tk = _pick_tile(K, _lane_tiles(caps["max_tile"]))
    grid = (M // tm, N // tn, K // tk)

    has_bias = b is not None
    has_res = residual is not None

    in_specs = [
        pl.BlockSpec((tm, tk), lambda i, j, k: (i, k)),
        pl.BlockSpec((tk, tn), lambda i, j, k: (k, j)),
    ]
    args = [x2d, w]
    bytes_accessed = (M * K * x2d.dtype.itemsize
                      + K * N * w.dtype.itemsize
                      + M * N * x2d.dtype.itemsize)
    if has_bias:
        # TODO(synk): could use pipeline_mode=pl.Buffered(1) here (constant
        # block index over k) to shave VMEM on v7x.
        in_specs.append(pl.BlockSpec((1, tn), lambda i, j, k: (0, j)))
        args.append(b.reshape(1, N))
        bytes_accessed += N * b.dtype.itemsize
    if has_res:
        in_specs.append(pl.BlockSpec((tm, tn), lambda i, j, k: (i, j)))
        args.append(residual)
        bytes_accessed += M * N * residual.dtype.itemsize

    cost = pl.CostEstimate(flops=2 * M * N * K, transcendentals=0,
                           bytes_accessed=bytes_accessed)

    return pl.pallas_call(
        functools.partial(_linear_kernel, relu=relu,
                          has_bias=has_bias, has_res=has_res),
        out_shape=jax.ShapeDtypeStruct((M, N), x2d.dtype),
        grid=grid,
        in_specs=in_specs,
        out_specs=pl.BlockSpec((tm, tn), lambda i, j, k: (i, j)),
        scratch_shapes=[pltpu.VMEM((tm, tn), jnp.float32)],
        compiler_params=pltpu.CompilerParams(
            dimension_semantics=("parallel", "parallel", "arbitrary"),
            vmem_limit_bytes=caps["vmem_limit"],
        ),
        cost_estimate=cost,
    )(*args)


def attention(q_arr, q_col, kv_arr, k_col, v_col, mask_add, *, h, d_model):
    """Multi-head attention fed directly from fused projections.

    q_arr:  (B, Sq, nq*D) — column block `q_col` (width D) holds the queries.
    kv_arr: (B, Sk, nk*D) — column blocks `k_col` / `v_col` hold keys / values.
    mask_add: (Mb, Sq, Sk) additive mask (0 / -1e9), Mb in {1, B}.
    """
    caps = _hw_caps()
    B, Sq = q_arr.shape[0], q_arr.shape[1]
    Sk = kv_arr.shape[1]
    D = d_model
    dk = D // h
    scale = 1.0 / math.sqrt(dk)

    if D % 128 != 0:
        # Fallback for lane-unaligned feature dims: slice once in XLA so every
        # block's last dim equals the full array dim.
        q_arr = q_arr[..., q_col * D:(q_col + 1) * D]
        k_arr = kv_arr[..., k_col * D:(k_col + 1) * D]
        v_arr = kv_arr[..., v_col * D:(v_col + 1) * D]
        q_col = k_col = v_col = 0
    else:
        k_arr = kv_arr
        v_arr = kv_arr

    mb = mask_add.shape[0]

    # Query-tile grid axis keeps per-step VMEM bounded (v7x has 64 MiB) and
    # provides pipeline / megacore parallelism when B is small.
    max_tq = max(8, (8 * 1024 * 1024) // max(1, Sk * 4))
    tq = _pick_tile(Sq, tuple(t for t in _m_tiles(caps["max_tile"])
                              if t <= min(512, max_tq)))

    q_map = lambda b, s: (b, s, q_col)
    k_map = lambda b, s: (b, 0, k_col)
    v_map = lambda b, s: (b, 0, v_col)
    if mb == B:
        m_map = lambda b, s: (b, s, 0)
    else:
        m_map = lambda b, s: (0, s, 0)       # shared (batch/head-invariant) mask

    # TODO(synk): for long sequences this should become a flash-style kernel
    # with K/V tiling; at these shapes full-Sk blocks fit VMEM easily.
    return pl.pallas_call(
        functools.partial(_attn_kernel, h=h, dk=dk, scale=scale),
        out_shape=jax.ShapeDtypeStruct((B, Sq, D), q_arr.dtype),
        grid=(B, Sq // tq),
        in_specs=[
            pl.BlockSpec((1, tq, D), q_map),
            pl.BlockSpec((1, Sk, D), k_map),
            pl.BlockSpec((1, Sk, D), v_map),
            pl.BlockSpec((1, tq, Sk), m_map),
        ],
        out_specs=pl.BlockSpec((1, tq, D), lambda b, s: (b, s, 0)),
        compiler_params=pltpu.CompilerParams(
            dimension_semantics=("parallel", "parallel"),
            vmem_limit_bytes=caps["vmem_limit"],
        ),
    )(q_arr, k_arr, v_arr, mask_add)


def layernorm(x2d, alpha, bias, eps=1e-6):
    """x2d: (M, D), alpha/bias: (1,) scalars -> (M, D)."""
    caps = _hw_caps()
    M, D = x2d.shape
    # Cap the row tile so double-buffered in+out f32 blocks fit comfortably
    # even for large D (tightest on v7x's 64 MiB VMEM).
    budget = caps["vmem_limit"] // 4
    max_tm = max(8, budget // max(1, 4 * D * 4))
    cands = tuple(t for t in (1024, 512, 256, 128, 64, 32, 16, 8)
                  if t <= min(caps["max_tile"], max_tm))
    tm = _pick_tile(M, cands)
    # TODO(synk): could fuse LayerNorm into the consumer matmul to avoid the
    # extra activation HBM round-trip.
    return pl.pallas_call(
        functools.partial(_layernorm_kernel, eps=eps),
        out_shape=jax.ShapeDtypeStruct((M, D), x2d.dtype),
        grid=(M // tm,),
        in_specs=[
            pl.BlockSpec((tm, D), lambda i: (i, 0)),
            pl.BlockSpec(memory_space=pltpu.MemorySpace.SMEM),
            pl.BlockSpec(memory_space=pltpu.MemorySpace.SMEM),
        ],
        out_specs=pl.BlockSpec((tm, D), lambda i: (i, 0)),
        compiler_params=pltpu.CompilerParams(
            dimension_semantics=("parallel",),
            vmem_limit_bytes=caps["vmem_limit"],
        ),
    )(x2d, alpha, bias)


# ----------------------------------------------------------------------------
# Model forward (glue in plain JAX, hot paths in Pallas kernels)
# ----------------------------------------------------------------------------
def _prep_additive_mask(mask, Sq, Sk):
    """(mb, 1, sq|1, sk|1) 0/1 mask -> (mb, Sq, Sk) additive mask (0 / -1e9).

    # TODO(synk): assumes the mask is head-invariant (as in the reference use).
    """
    mb = mask.shape[0]
    m = jnp.broadcast_to(mask, (mb, mask.shape[1], Sq, Sk))[:, 0]
    return jnp.where(m == 0, -1.0e9, 0.0).astype(jnp.bfloat16)


def self_attention_forward(p, n2d, bsd, mask_add, h, residual):
    B, S, D = bsd
    qkv = linear(n2d, p["wqkv"]).reshape(B, S, 3 * D)   # one fused projection
    # q/k/v are column blocks 0/1/2 of the fused array — no HBM slices.
    ctx = attention(qkv, 0, qkv, 1, 2, mask_add, h=h, d_model=D)
    return linear(ctx.reshape(-1, D), p["wo"], residual=residual)


def cross_attention_forward(p, n2d, bsd, enc, mask_add, h, residual):
    B, S, D = bsd
    Sk = enc.shape[1]
    q = linear(n2d, p["wq"]).reshape(B, S, D)
    kv = linear(enc.reshape(-1, D), p["wkv"]).reshape(B, Sk, 2 * D)
    ctx = attention(q, 0, kv, 0, 1, mask_add, h=h, d_model=D)
    return linear(ctx.reshape(-1, D), p["wo"], residual=residual)


def ffn_forward(p, n2d, residual):
    h1 = linear(n2d, p["w1"], b=p["b1"], relu=True)
    return linear(h1, p["w2"], b=p["b2"], residual=residual)


def decoder_block_forward(p, x2d, bsd, enc, src_m, tgt_m, h):
    # TODO(synk): nn.Dropout is treated as identity (inference mode).
    n1 = layernorm(x2d, *p["ln1"])
    x2d = self_attention_forward(p["self_attn"], n1, bsd, tgt_m, h, residual=x2d)
    n2 = layernorm(x2d, *p["ln2"])
    x2d = cross_attention_forward(p["cross_attn"], n2, bsd, enc, src_m, h,
                                  residual=x2d)
    n3 = layernorm(x2d, *p["ln3"])
    x2d = ffn_forward(p["ffn"], n3, residual=x2d)
    return x2d


def decoder_forward(params, x, enc, src_mask, tgt_mask, h):
    B, S, D = x.shape
    Sk = enc.shape[1]
    tgt_m = _prep_additive_mask(tgt_mask, S, S)
    src_m = _prep_additive_mask(src_mask, S, Sk)
    x2d = x.reshape(-1, D)
    for bp in params["blocks"]:
        x2d = decoder_block_forward(bp, x2d, (B, S, D), enc, src_m, tgt_m, h)
    return layernorm(x2d, *params["norm"]).reshape(B, S, D)


# ----------------------------------------------------------------------------
# Deterministic parameter init (mirrors module __init__ shapes; QKV pre-fused,
# weights stored bf16 for MXU-native matmuls / halved weight HBM traffic).
# ----------------------------------------------------------------------------
def init_decoder_params(key, n_blocks, d_model, d_ff):
    def dense(k, fan_in, fan_out):
        bound = 1.0 / math.sqrt(fan_in)
        w = jax.random.uniform(k, (fan_in, fan_out), jnp.float32, -bound, bound)
        return w.astype(jnp.bfloat16)

    def ln_params():
        return (jnp.ones((1,), jnp.float32), jnp.zeros((1,), jnp.float32))

    blocks = []
    for b in range(n_blocks):
        ks = jax.random.split(jax.random.fold_in(key, b), 10)
        wq_s = dense(ks[0], d_model, d_model)
        wk_s = dense(ks[1], d_model, d_model)
        wv_s = dense(ks[2], d_model, d_model)
        wq_c = dense(ks[4], d_model, d_model)
        wk_c = dense(ks[5], d_model, d_model)
        wv_c = dense(ks[6], d_model, d_model)
        blocks.append({
            "self_attn": {
                "wqkv": jnp.concatenate([wq_s, wk_s, wv_s], axis=1),
                "wo": dense(ks[3], d_model, d_model),
            },
            "cross_attn": {
                "wq": wq_c,
                "wkv": jnp.concatenate([wk_c, wv_c], axis=1),
                "wo": dense(ks[7], d_model, d_model),
            },
            "ffn": {
                "w1": dense(ks[8], d_model, d_ff),
                "b1": jnp.zeros((d_ff,), jnp.float32),
                "w2": dense(ks[9], d_ff, d_model),
                "b2": jnp.zeros((d_model,), jnp.float32),
            },
            "ln1": ln_params(),
            "ln2": ln_params(),
            "ln3": ln_params(),
        })
    return {"blocks": blocks, "norm": ln_params()}


# ----------------------------------------------------------------------------
if __name__ == "__main__":
    B, S_tgt, S_src = 2, 8, 8
    d_model, h, d_ff, n_blocks = 128, 4, 256, 2   # lane-aligned feature dims

    key = jax.random.PRNGKey(0)
    k_x, k_enc, k_par = jax.random.split(key, 3)
    x = jax.random.normal(k_x, (B, S_tgt, d_model), jnp.float32)
    encoder_output = jax.random.normal(k_enc, (B, S_src, d_model), jnp.float32)

    # src mask: all ones (no padding); tgt mask: causal lower-triangular.
    src_mask = jnp.ones((1, 1, 1, S_src), jnp.int32)
    tgt_mask = jnp.tril(jnp.ones((S_tgt, S_tgt), jnp.int32))[None, None]

    params = init_decoder_params(k_par, n_blocks, d_model, d_ff)

    out = decoder_forward(params, x, encoder_output, src_mask, tgt_mask, h)
    out = jax.block_until_ready(out)
    assert out.shape == (B, S_tgt, d_model)
    assert bool(jnp.all(jnp.isfinite(out)))
    print("KERNEL_OK")
</pallas_src>

<mosaic_0001>
module attributes {stable_mosaic.version = 11 : i64} {
  func.func @_layernorm_kernel(%arg0: i32, %arg1: memref<16x128xf32, #tpu.memory_space<vmem>>, %arg2: memref<1xf32, #tpu.memory_space<smem>>, %arg3: memref<1xf32, #tpu.memory_space<smem>>, %arg4: memref<16x128xf32, #tpu.memory_space<vmem>>) attributes {dimension_semantics = [#tpu.dimension_semantics<parallel>], iteration_bounds = array<i64: 1>, scalar_prefetch = 0 : i64, scratch_operands = 0 : i64, tpu.core_type = #tpu.core_type<tc>, window_params = [{transform_indices = @transform_0, window_bounds = array<i64: 16, 128>}, {transform_indices = @transform_1, window_bounds = array<i64: 1>}, {transform_indices = @transform_2, window_bounds = array<i64: 1>}, {transform_indices = @transform_3, window_bounds = array<i64: 16, 128>}]} {
    %c0 = arith.constant 0 : index
    %c0_0 = arith.constant 0 : index
    %0 = vector.load %arg1[%c0, %c0_0] : memref<16x128xf32, #tpu.memory_space<vmem>>, vector<16x128xf32>
    %cst = arith.constant dense<0.000000e+00> : vector<16xf32>
    %1 = vector.multi_reduction <add>, %0, %cst [1] : vector<16x128xf32> to vector<16xf32>
    %2 = vector.shape_cast %1 : vector<16xf32> to vector<16x1xf32>
    %cst_1 = arith.constant 1.280000e+02 : f32
    %3 = vector.broadcast %cst_1 : f32 to vector<16x1xf32>
    %4 = arith.divf %2, %3 : vector<16x1xf32>
    %5 = vector.broadcast %4 : vector<16x1xf32> to vector<16x128xf32>
    %6 = arith.subf %0, %5 : vector<16x128xf32>
    %7 = arith.mulf %6, %6 : vector<16x128xf32>
    %cst_2 = arith.constant dense<0.000000e+00> : vector<16xf32>
    %8 = vector.multi_reduction <add>, %7, %cst_2 [1] : vector<16x128xf32> to vector<16xf32>
    %9 = vector.shape_cast %8 : vector<16xf32> to vector<16x1xf32>
    %cst_3 = arith.constant 0.00787401571 : f32
    %10 = vector.broadcast %cst_3 : f32 to vector<16x1xf32>
    %11 = arith.mulf %9, %10 : vector<16x1xf32>
    %12 = math.sqrt %11 : vector<16x1xf32>
    %c0_4 = arith.constant 0 : index
    %13 = memref.load %arg2[%c0_4] : memref<1xf32, #tpu.memory_space<smem>>
    %14 = vector.broadcast %13 : f32 to vector<16x128xf32>
    %15 = arith.mulf %14, %6 : vector<16x128xf32>
    %cst_5 = arith.constant 9.99999997E-7 : f32
    %16 = vector.broadcast %cst_5 : f32 to vector<16x1xf32>
    %17 = arith.addf %12, %16 : vector<16x1xf32>
    %18 = vector.broadcast %17 : vector<16x1xf32> to vector<16x128xf32>
    %19 = arith.divf %15, %18 : vector<16x128xf32>
    %c0_6 = arith.constant 0 : index
    %20 = memref.load %arg3[%c0_6] : memref<1xf32, #tpu.memory_space<smem>>
    %21 = vector.broadcast %20 : f32 to vector<16x128xf32>
    %22 = arith.addf %19, %21 : vector<16x128xf32>
    %c0_7 = arith.constant 0 : index
    %c0_8 = arith.constant 0 : index
    %23 = vector.load %arg4[%c0_7, %c0_8] : memref<16x128xf32, #tpu.memory_space<vmem>>, vector<16x128xf32>
    tpu.vector_store %arg4[%c0_7, %c0_8], %22 {strides = array<i32>} : memref<16x128xf32, #tpu.memory_space<vmem>>, vector<16x128xf32>,
    return
  }
  func.func @transform_0(%arg0: i32) -> (i32, i32) {
    %c0_i32 = arith.constant 0 : i32
    %c0_i32_0 = arith.constant 0 : i32
    return %arg0, %c0_i32 : i32, i32
  }
  func.func @transform_1(%arg0: i32) -> i32 {
    %c0_i32 = arith.constant 0 : i32
    %c0_i32_0 = arith.constant 0 : i32
    return %c0_i32 : i32
  }
  func.func @transform_2(%arg0: i32) -> i32 {
    %c0_i32 = arith.constant 0 : i32
    %c0_i32_0 = arith.constant 0 : i32
    return %c0_i32 : i32
  }
  func.func @transform_3(%arg0: i32) -> (i32, i32) {
    %c0_i32 = arith.constant 0 : i32
    %c0_i32_0 = arith.constant 0 : i32
    return %arg0, %c0_i32 : i32, i32
  }
}

</mosaic_0001>

<llo_original>
// kernel: tpu_custom_call.1
$region0: #{tpu_custom_call.1}
  #allocation0 [shape = 'u32[]', space=smem, size = 0x4, offset = 0x4, fixed_abs, tag = 'smem constant byte address 0x4 - core index']
  #allocation1 [shape = 'u32[144,128]{1,0:T(1,128)}', space=vmem, size = 0x12000, scoped, tag = 'internal scratch']
  #allocation2 [shape = 'f32[1]{0:T(128)S(6)}', space=smem, size = 0x200, scoped, tag = 'scoped memory for tpu_custom_call.1']
  #allocation3 [shape = 'f32[1]{0:T(128)S(6)}', space=smem, size = 0x200, scoped, tag = 'scoped memory for tpu_custom_call.1']
  %s0 = inlined_call_operand.hbm [shape: f32[16,128], index: 0, kind: input, shape index: {}]
  %s1 = inlined_call_operand.<no memory space> [shape: f32[1], index: 1, kind: input, shape index: {}]
  %s2 = inlined_call_operand.<no memory space> [shape: f32[1], index: 2, kind: input, shape index: {}]
  %s3 = inlined_call_operand.hbm [shape: f32[16,128], index: 3, kind: output, shape index: {}]
  %s4 = sld [smem:[#allocation0]]
  $region26: #{tpu_custom_call.1} parent=0
    _
  %s6 = ssub.s32 1, %s4
  %s7 = scalar_select 0, %s6, %s4
  %8 = sst [smem:[#allocation2]] %s1
  %9 = sst [smem:[#allocation3]] %s2
  $region1: #{tpu_custom_call.1} parent=0
    #allocation4 [shape = 'u8[8192]{0}', space=vmem, size = 0x2000, scoped, tag = 'input window, operand 0, single buffered']
    #allocation5 [shape = 's32[1]{0}', space=sflag, size = 0x4, scoped, tag = 'scoped memory for tpu_custom_call.1']
    #allocation6 [shape = 's32[1]{0}', space=sflag, size = 0x4, scoped, tag = 'scoped memory for tpu_custom_call.1']
    #allocation7 [shape = 'u8[8192]{0}', space=vmem, size = 0x2000, scoped, tag = 'output window, operand 0, single buffered']
    %10 = vsyncpa [#allocation5], 0
    %11 = vsyncpa [#allocation6], 0
    // Predicated region
    $region2: #{tpu_custom_call.1} parent=1 // pred_check
      _
    $region3: #{tpu_custom_call.1} parent=1 // pred_check_branch
      %13 = sbr.rel (0) target = $region5
    $region4: #{tpu_custom_call.1} parent=1 // pred_region
      %s15 = ssub.s32 256, 256
      %16 = vsyncadd [#allocation5], %s15
      %s17 = sshll.u32 [#allocation4], 4
      %s18 = int_to_ptr.vmem [resolvable:$true] %s17
      %23 = dma.hbm_to_vmem [thread:$0]  %s0, 256, %s18, [#allocation5], 128, 128, 8
    $region5: #{tpu_custom_call.1} parent=1 // pred_fallthru
      _
    // Predicated region
    $region6: #{tpu_custom_call.1} parent=1 // pred_check
      _
    $region7: #{tpu_custom_call.1} parent=1 // pred_check_branch
      %25 = sbr.rel (0) target = $region9
    $region8: #{tpu_custom_call.1} parent=1 // pred_region
      _
    $region9: #{tpu_custom_call.1} parent=1 // pred_fallthru
      _
    // Predicated region
    $region10: #{tpu_custom_call.1} parent=1 // pred_check
      _
    $region11: #{tpu_custom_call.1} parent=1 // pred_check_branch
      %27 = sbr.rel (0) target = $region13
    $region12: #{tpu_custom_call.1} parent=1 // pred_region
      _
    $region13: #{tpu_custom_call.1} parent=1 // pred_fallthru
      _
    // Predicated region
    $region14: #{tpu_custom_call.1} parent=1 // pred_check
      _
    $region15: #{tpu_custom_call.1} parent=1 // pred_check_branch
      %29 = sbr.rel (0) target = $region17
    $region16: #{tpu_custom_call.1} parent=1 // pred_region
      %30 = dma.done [#allocation5], 256
    $region17: #{tpu_custom_call.1} parent=1 // pred_fallthru
      _
    %v31 = vld [vmem:[#allocation4] sm:$0xff]
    %v32 = vld [vmem:[#allocation4 + $0x8] sm:$0xff]
    %33 = vadd.xlane.f32.xlu0 %v31
    %v34 = vpop.xlane.xlu0 %33
    %35 = vadd.xlane.f32.xlu0 %v32
    %v36 = vpop.xlane.xlu0 %35
    %v37 = vrcp.pop 128.0
    %v38 = vmul.f32 %v34, %v37
    %v39 = vmul.f32 %v36, %v37
    %v40 = vsub.f32 %v31, %v38
    %v41 = vsub.f32 %v32, %v39
    %v42 = vmul.f32 %v40, %v40
    %v43 = vmul.f32 %v41, %v41
    %44 = vadd.xlane.f32.xlu0 %v42
    %v45 = vpop.xlane.xlu0 %44
    %46 = vadd.xlane.f32.xlu0 %v43
    %v47 = vpop.xlane.xlu0 %46
    %v48 = vmul.f32 %v45, 0.007874016
    %v49 = vmul.f32 %v47, 0.007874016
    %v50 = vrsqrt.pop %v48
    %v51 = vmul.f32 %v48, %v50
    %vm52 = vcmp.eq.f32.partialorder %v48, inf
    %v53 = vsel %vm52, %v48, %v51
    %vm54 = vcmp.eq.f32.partialorder %v48, 0.0
    %v55 = vand.u32 %v48, 2147483648
    %v56 = vsel %vm54, %v55, %v53
    %v57 = vrsqrt.pop %v49
    %v58 = vmul.f32 %v49, %v57
    %vm59 = vcmp.eq.f32.partialorder %v49, inf
    %v60 = vsel %vm59, %v49, %v58
    %vm61 = vcmp.eq.f32.partialorder %v49, 0.0
    %v62 = vand.u32 %v49, 2147483648
    %v63 = vsel %vm61, %v62, %v60
    %s64 = sld [smem:[#allocation2]]
    %v65 = vstv %s64
    %v66 = vmul.f32 %v65, %v40
    %v67 = vmul.f32 %v65, %v41
    %v68 = vadd.f32 %v56, 1e-06
    %v69 = vadd.f32 %v63, 1e-06
    %v70 = vrcp.pop %v68
    %v71 = vmul.f32 %v66, %v70
    %v72 = vrcp.pop %v69
    %v73 = vmul.f32 %v67, %v72
    %s74 = sld [smem:[#allocation3]]
    %v75 = vstv %s74
    %v76 = vadd.f32 %v71, %v75
    %v77 = vadd.f32 %v73, %v75
    %78 = vst [vmem:[#allocation7] sm:$0xff] %v76
    %79 = vst [vmem:[#allocation7 + $0x8] sm:$0xff] %v77
    // Predicated region
    $region18: #{tpu_custom_call.1} parent=1 // pred_check
      _
    $region19: #{tpu_custom_call.1} parent=1 // pred_check_branch
      %81 = sbr.rel (0) target = $region21
    $region20: #{tpu_custom_call.1} parent=1 // pred_region
      %s83 = ssub.s32 256, 256
      %84 = vsyncadd [#allocation6], %s83
      %s85 = sshll.u32 [#allocation7], 4
      %s86 = int_to_ptr.vmem [resolvable:$true] %s85
      %91 = dma.vmem_to_hbm [thread:$0]  %s86, 256, %s3, [#allocation6], 128, 128, 8
    $region21: #{tpu_custom_call.1} parent=1 // pred_fallthru
      _
    // Predicated region
    $region22: #{tpu_custom_call.1} parent=1 // pred_check
      _
    $region23: #{tpu_custom_call.1} parent=1 // pred_check_branch
      %93 = sbr.rel (0) target = $region25
    $region24: #{tpu_custom_call.1} parent=1 // pred_region
      %94 = dma.done [#allocation6], 256
    $region25: #{tpu_custom_call.1} parent=1 // pred_fallthru
      _
    %95 = vsyncpa [#allocation5], 1
    %96 = vsyncpa [#allocation6], 1

</llo_original>
